<compile_context>
chip_gen: v5e
topology: v5e:2x2
jax: 0.10.0
libtpu: 0.0.40
codegen_flags: <defaults>
</compile_context>

<pallas_src>
import functools

import jax
import jax.numpy as jnp
from jax.experimental import pallas as pl
from jax.experimental.pallas import tpu as pltpu


def _round_up(x, m):
    return (x + m - 1) // m * m


@functools.lru_cache(maxsize=None)
def _vmem_capacity_bytes():
    """Per-TensorCore VMEM capacity; conservative (v7x) fallback."""
    try:
        info = pltpu.get_tpu_info()
        cap = getattr(info, "vmem_capacity_bytes", None)
        if cap:
            return int(cap)
    except Exception:
        pass
    return 64 << 20


def _make_ce_kernel(n_true, tile_n, tile_c, n_pad):
    """Builds the kernel closed over the true (unpadded) problem sizes."""
    mask_rows = (n_pad != n_true)  # static: only emit row masking if needed

    def kernel(x_ref, t_ref, out_ref, m_sc, l_sc, p_sc):
        i = pl.program_id(0)          # batch-tile index ("parallel")
        j = pl.program_id(1)          # class-tile index (reduction, "arbitrary")

        # (re)initialize the per-row online-LSE state at the first class tile
        @pl.when(j == 0)
        def _init():
            m_sc[...] = jnp.full_like(m_sc, -jnp.inf)
            l_sc[...] = jnp.zeros_like(l_sc)
            p_sc[...] = jnp.zeros_like(p_sc)

        x = x_ref[...].astype(jnp.float32)            # (tile_n, tile_c)

        # Online logsumexp update.  Padded columns (if any) were filled with
        # finfo(dtype).min by the wrapper: they never win the max and their
        # exp() underflows to 0, so no per-element masking is needed here.
        m_prev = m_sc[...]
        m_new = jnp.maximum(m_prev, jnp.max(x, axis=-1, keepdims=True))
        l_sc[...] = (l_sc[...] * jnp.exp(m_prev - m_new)
                     + jnp.sum(jnp.exp(x - m_new), axis=-1, keepdims=True))
        m_sc[...] = m_new

        # Streaming one-hot gather of logits[r, target_r]: compare tile-local
        # column iota against the per-row shifted target (saves one full-tile
        # integer add per element vs materializing global column ids).
        col_local = jax.lax.broadcasted_iota(jnp.int32, x.shape, 1)
        t_local = t_ref[...] - j * tile_c             # (tile_n, 1) int32
        p_sc[...] = p_sc[...] + jnp.sum(
            jnp.where(col_local == t_local, x, 0.0), axis=-1, keepdims=True)

        # finalize: per-row NLL, mask padded rows, emit lane-dense partial sum
        @pl.when(j == pl.num_programs(1) - 1)
        def _finalize():
            per_row = m_sc[...] + jnp.log(l_sc[...]) - p_sc[...]   # (tile_n, 1)
            if mask_rows:
                row_local = jax.lax.broadcasted_iota(jnp.int32, per_row.shape, 0)
                per_row = jnp.where(row_local < (n_true - i * tile_n),
                                    per_row, 0.0)
            partial = jnp.sum(per_row)
            # Splat the scalar across the lane-dense (8,128) output block
            # (plain broadcast + unmasked store); wrapper reads [0,0] per block.
            out_ref[...] = jnp.full((8, 128), partial, dtype=jnp.float32)

    return kernel


@functools.partial(jax.jit, static_argnames=("tile_n", "tile_c"))
def cross_entropy_loss(logits, targets, *, tile_n=None, tile_c=None):
    """logits: (N, C) float (f32/bf16); targets: (N,) int. Returns scalar f32."""
    N, C = logits.shape
    itemsize = jnp.dtype(logits.dtype).itemsize

    # ---- generation-aware VMEM budget (v5e/v6e: 128 MiB; v7x: 64 MiB/TC) ----
    vmem_cap = _vmem_capacity_bytes()
    if vmem_cap >= (100 << 20):
        buf_budget_bytes = 8 << 20      # per logits VMEM buffer
        vmem_limit = 96 << 20
    else:
        buf_budget_bytes = 4 << 20
        vmem_limit = 48 << 20

    # ---- tile sizing (lane axis multiple of 128; dtype-aware row budget) ----
    c_pad = _round_up(C, 128)
    if tile_c is None:
        tile_c = min(c_pad, 2048)
    tile_c = _round_up(tile_c, 128)
    c_pad = _round_up(c_pad, tile_c)

    if tile_n is None:
        budget_elems = buf_budget_bytes // itemsize       # dtype-aware
        tile_n = max(8, min(1024, budget_elems // tile_c))
    tile_n = _round_up(tile_n, 8)
    tile_n = min(tile_n, _round_up(N, 8))
    # Guarantee >= 2 row tiles (when N allows) so the "parallel" batch axis can
    # shard across both TensorCores on v7x megacore.
    if N >= 16:
        tile_n = min(tile_n, _round_up((N + 1) // 2, 8))
    n_pad = _round_up(N, tile_n)

    # ---- pad only when shapes are not tile-aligned.  Class-axis padding uses
    #      finfo(dtype).min so NO per-element masking is needed in the kernel;
    #      row padding uses zeros (finite) and is excluded in finalize. ----
    x = logits
    if c_pad != C:
        neg_fill = jnp.finfo(x.dtype).min
        x = jnp.pad(x, ((0, 0), (0, c_pad - C)), constant_values=neg_fill)
    if n_pad != N:
        x = jnp.pad(x, ((0, n_pad - N), (0, 0)))
    t = targets.astype(jnp.int32).reshape(N, 1)
    if n_pad != N:
        t = jnp.pad(t, ((0, n_pad - N), (0, 0)))

    n_row_tiles = n_pad // tile_n
    n_col_tiles = c_pad // tile_c

    kernel = _make_ce_kernel(N, tile_n, tile_c, n_pad)

    cost = pl.CostEstimate(
        flops=int(6 * N * C),
        transcendentals=int(N * C),
        bytes_accessed=int(N * C * itemsize + N * 4 + n_row_tiles * 8 * 128 * 4),
    )

    partials = pl.pallas_call(
        kernel,
        out_shape=jax.ShapeDtypeStruct((n_row_tiles * 8, 128), jnp.float32),
        grid_spec=pltpu.PrefetchScalarGridSpec(
            num_scalar_prefetch=0,
            grid=(n_row_tiles, n_col_tiles),
            in_specs=[
                pl.BlockSpec((tile_n, tile_c), lambda i, j: (i, j)),
                pl.BlockSpec((tile_n, 1), lambda i, j: (i, 0)),
            ],
            out_specs=pl.BlockSpec((8, 128), lambda i, j: (i, 0)),
            scratch_shapes=[
                pltpu.VMEM((tile_n, 1), jnp.float32),   # running max m
                pltpu.VMEM((tile_n, 1), jnp.float32),   # running sum-exp l
                pltpu.VMEM((tile_n, 1), jnp.float32),   # picked logit
            ],
        ),
        compiler_params=pltpu.CompilerParams(
            dimension_semantics=("parallel", "arbitrary"),
            vmem_limit_bytes=vmem_limit),
        cost_estimate=cost,
    )(x, t)

    # tiny final reduction + mean over the TRUE batch size
    per_tile = partials.reshape(n_row_tiles, 8, 128)[:, 0, 0]
    return jnp.sum(per_tile) / jnp.float32(N)


def _ref_ce(logits, targets):
    lg = logits.astype(jnp.float32)
    lse = jax.nn.logsumexp(lg, axis=-1)
    picked = jnp.take_along_axis(
        lg, targets[:, None].astype(jnp.int32), axis=-1)[:, 0]
    return jnp.mean(lse - picked)


if __name__ == "__main__":
    key = jax.random.PRNGKey(0)
    k1, k2, k3, k4, k5 = jax.random.split(key, 5)

    # small shape implied by the module: batch=8 samples, 32 classes
    N, C = 8, 32
    logits = jax.random.normal(k1, (N, C), dtype=jnp.float32)
    targets = jax.random.randint(k2, (N,), 0, C, dtype=jnp.int32)
    loss = cross_entropy_loss(logits, targets)
    jax.block_until_ready(loss)
    assert jnp.allclose(loss, _ref_ce(logits, targets), atol=1e-5, rtol=1e-5), (
        loss, _ref_ce(logits, targets))

    # non-divisible shape exercising N/C tiling, padding paths and online LSE
    N2, C2 = 300, 1000
    logits2 = jax.random.normal(k3, (N2, C2), dtype=jnp.float32)
    targets2 = jax.random.randint(k4, (N2,), 0, C2, dtype=jnp.int32)
    loss2 = cross_entropy_loss(logits2, targets2, tile_n=128, tile_c=256)
    jax.block_until_ready(loss2)
    assert jnp.allclose(loss2, _ref_ce(logits2, targets2), atol=1e-4, rtol=1e-4), (
        loss2, _ref_ce(logits2, targets2))

    # bf16 logits fed directly (no wrapper upcast); kernel upcasts per tile
    logits3 = jax.random.normal(k5, (N2, C2), dtype=jnp.bfloat16)
    loss3 = cross_entropy_loss(logits3, targets2)
    jax.block_until_ready(loss3)
    assert jnp.allclose(loss3, _ref_ce(logits3, targets2), atol=1e-4, rtol=1e-4), (
        loss3, _ref_ce(logits3, targets2))

    print("KERNEL_OK")
</pallas_src>

<mosaic_0001>
module attributes {stable_mosaic.version = 11 : i64} {
  func.func @kernel(%arg0: i32, %arg1: i32, %arg2: memref<8x128xf32, #tpu.memory_space<vmem>>, %arg3: memref<8x1xi32, #tpu.memory_space<vmem>>, %arg4: memref<8x128xf32, #tpu.memory_space<vmem>>, %arg5: memref<8x1xf32, #tpu.memory_space<vmem>>, %arg6: memref<8x1xf32, #tpu.memory_space<vmem>>, %arg7: memref<8x1xf32, #tpu.memory_space<vmem>>) attributes {dimension_semantics = [#tpu.dimension_semantics<parallel>, #tpu.dimension_semantics<arbitrary>], iteration_bounds = array<i64: 1, 1>, scalar_prefetch = 0 : i64, scratch_operands = 3 : i64, tpu.core_type = #tpu.core_type<tc>, window_params = [{transform_indices = @transform_0, window_bounds = array<i64: 8, 128>}, {transform_indices = @transform_1, window_bounds = array<i64: 8, 1>}, {transform_indices = @transform_2, window_bounds = array<i64: 8, 128>}]} {
    %c0_i32 = arith.constant 0 : i32
    %0 = arith.cmpi eq, %arg1, %c0_i32 : i32
    %1 = arith.extui %0 : i1 to i32
    %c0_i32_0 = arith.constant 0 : i32
    %2 = arith.cmpi ne, %1, %c0_i32_0 : i32
    scf.if %2 {
      %cst_21 = arith.constant 0xFF800000 : f32
      %37 = vector.broadcast %cst_21 : f32 to vector<8x1xf32>
      %c0_22 = arith.constant 0 : index
      %c0_23 = arith.constant 0 : index
      %38 = vector.load %arg5[%c0_22, %c0_23] : memref<8x1xf32, #tpu.memory_space<vmem>>, vector<8x1xf32>
      tpu.vector_store %arg5[%c0_22, %c0_23], %37 {strides = array<i32>} : memref<8x1xf32, #tpu.memory_space<vmem>>, vector<8x1xf32>,
      %cst_24 = arith.constant 0.000000e+00 : f32
      %39 = vector.broadcast %cst_24 : f32 to vector<8x1xf32>
      %c0_25 = arith.constant 0 : index
      %c0_26 = arith.constant 0 : index
      %40 = vector.load %arg6[%c0_25, %c0_26] : memref<8x1xf32, #tpu.memory_space<vmem>>, vector<8x1xf32>
      tpu.vector_store %arg6[%c0_25, %c0_26], %39 {strides = array<i32>} : memref<8x1xf32, #tpu.memory_space<vmem>>, vector<8x1xf32>,
      %cst_27 = arith.constant 0.000000e+00 : f32
      %41 = vector.broadcast %cst_27 : f32 to vector<8x1xf32>
      %c0_28 = arith.constant 0 : index
      %c0_29 = arith.constant 0 : index
      %42 = vector.load %arg7[%c0_28, %c0_29] : memref<8x1xf32, #tpu.memory_space<vmem>>, vector<8x1xf32>
      tpu.vector_store %arg7[%c0_28, %c0_29], %41 {strides = array<i32>} : memref<8x1xf32, #tpu.memory_space<vmem>>, vector<8x1xf32>,
    } else {
    }
    %c0 = arith.constant 0 : index
    %c0_1 = arith.constant 0 : index
    %3 = vector.load %arg2[%c0, %c0_1] : memref<8x128xf32, #tpu.memory_space<vmem>>, vector<8x128xf32>
    %c0_2 = arith.constant 0 : index
    %c0_3 = arith.constant 0 : index
    %4 = vector.load %arg5[%c0_2, %c0_3] : memref<8x1xf32, #tpu.memory_space<vmem>>, vector<8x1xf32>
    %cst = arith.constant dense<0xFF800000> : vector<8xf32>
    %5 = vector.multi_reduction <maximumf>, %3, %cst [1] : vector<8x128xf32> to vector<8xf32>
    %6 = vector.shape_cast %5 : vector<8xf32> to vector<8x1xf32>
    %7 = arith.maximumf %4, %6 : vector<8x1xf32>
    %c0_4 = arith.constant 0 : index
    %c0_5 = arith.constant 0 : index
    %8 = vector.load %arg6[%c0_4, %c0_5] : memref<8x1xf32, #tpu.memory_space<vmem>>, vector<8x1xf32>
    %9 = arith.subf %4, %7 : vector<8x1xf32>
    %10 = math.exp %9 : vector<8x1xf32>
    %11 = arith.mulf %8, %10 : vector<8x1xf32>
    %12 = vector.broadcast %7 : vector<8x1xf32> to vector<8x128xf32>
    %13 = arith.subf %3, %12 : vector<8x128xf32>
    %14 = math.exp %13 : vector<8x128xf32>
    %cst_6 = arith.constant dense<0.000000e+00> : vector<8xf32>
    %15 = vector.multi_reduction <add>, %14, %cst_6 [1] : vector<8x128xf32> to vector<8xf32>
    %16 = vector.shape_cast %15 : vector<8xf32> to vector<8x1xf32>
    %17 = arith.addf %11, %16 : vector<8x1xf32>
    %c0_7 = arith.constant 0 : index
    %c0_8 = arith.constant 0 : index
    %18 = vector.load %arg6[%c0_7, %c0_8] : memref<8x1xf32, #tpu.memory_space<vmem>>, vector<8x1xf32>
    tpu.vector_store %arg6[%c0_7, %c0_8], %17 {strides = array<i32>} : memref<8x1xf32, #tpu.memory_space<vmem>>, vector<8x1xf32>,
    %c0_9 = arith.constant 0 : index
    %c0_10 = arith.constant 0 : index
    %19 = vector.load %arg5[%c0_9, %c0_10] : memref<8x1xf32, #tpu.memory_space<vmem>>, vector<8x1xf32>
    tpu.vector_store %arg5[%c0_9, %c0_10], %7 {strides = array<i32>} : memref<8x1xf32, #tpu.memory_space<vmem>>, vector<8x1xf32>,
    %20 = tpu.iota {dimensions = array<i32: 1>} : vector<8x128xi32>
    %c0_11 = arith.constant 0 : index
    %c0_12 = arith.constant 0 : index
    %21 = vector.load %arg3[%c0_11, %c0_12] : memref<8x1xi32, #tpu.memory_space<vmem>>, vector<8x1xi32>
    %c128_i32 = arith.constant 128 : i32
    %22 = arith.muli %arg1, %c128_i32 : i32
    %23 = vector.broadcast %22 : i32 to vector<8x1xi32>
    %24 = arith.subi %21, %23 : vector<8x1xi32>
    %c0_13 = arith.constant 0 : index
    %c0_14 = arith.constant 0 : index
    %25 = vector.load %arg7[%c0_13, %c0_14] : memref<8x1xf32, #tpu.memory_space<vmem>>, vector<8x1xf32>
    %26 = vector.broadcast %24 : vector<8x1xi32> to vector<8x128xi32>
    %27 = arith.cmpi eq, %20, %26 : vector<8x128xi32>
    %cst_15 = arith.constant 0.000000e+00 : f32
    %28 = vector.broadcast %cst_15 : f32 to vector<8x128xf32>
    %29 = arith.select %27, %3, %28 : vector<8x128xi1>, vector<8x128xf32>
    %cst_16 = arith.constant dense<0.000000e+00> : vector<8xf32>
    %30 = vector.multi_reduction <add>, %29, %cst_16 [1] : vector<8x128xf32> to vector<8xf32>
    %31 = vector.shape_cast %30 : vector<8xf32> to vector<8x1xf32>
    %32 = arith.addf %25, %31 : vector<8x1xf32>
    %c0_17 = arith.constant 0 : index
    %c0_18 = arith.constant 0 : index
    %33 = vector.load %arg7[%c0_17, %c0_18] : memref<8x1xf32, #tpu.memory_space<vmem>>, vector<8x1xf32>
    tpu.vector_store %arg7[%c0_17, %c0_18], %32 {strides = array<i32>} : memref<8x1xf32, #tpu.memory_space<vmem>>, vector<8x1xf32>,
    %c0_i32_19 = arith.constant 0 : i32
    %34 = arith.cmpi eq, %arg1, %c0_i32_19 : i32
    %35 = arith.extui %34 : i1 to i32
    %c0_i32_20 = arith.constant 0 : i32
    %36 = arith.cmpi ne, %35, %c0_i32_20 : i32
    scf.if %36 {
      %c0_21 = arith.constant 0 : index
      %c0_22 = arith.constant 0 : index
      %37 = vector.load %arg5[%c0_21, %c0_22] : memref<8x1xf32, #tpu.memory_space<vmem>>, vector<8x1xf32>
      %c0_23 = arith.constant 0 : index
      %c0_24 = arith.constant 0 : index
      %38 = vector.load %arg6[%c0_23, %c0_24] : memref<8x1xf32, #tpu.memory_space<vmem>>, vector<8x1xf32>
      %39 = math.log %38 : vector<8x1xf32>
      %40 = arith.addf %37, %39 : vector<8x1xf32>
      %c0_25 = arith.constant 0 : index
      %c0_26 = arith.constant 0 : index
      %41 = vector.load %arg7[%c0_25, %c0_26] : memref<8x1xf32, #tpu.memory_space<vmem>>, vector<8x1xf32>
      %42 = arith.subf %40, %41 : vector<8x1xf32>
      %43 = vector.shape_cast %42 : vector<8x1xf32> to vector<1x8x1xf32>
      %cst_27 = arith.constant dense<0.000000e+00> : vector<1xf32>
      %44 = vector.multi_reduction <add>, %43, %cst_27 [1, 2] : vector<1x8x1xf32> to vector<1xf32>
      %45 = vector.shape_cast %44 : vector<1xf32> to vector<1x1x1xf32>
      %46 = vector.extract %45[0, 0, 0] : f32 from vector<1x1x1xf32>
      %47 = vector.broadcast %46 : f32 to vector<8x128xf32>
      %c0_28 = arith.constant 0 : index
      %c0_29 = arith.constant 0 : index
      %48 = vector.load %arg4[%c0_28, %c0_29] : memref<8x128xf32, #tpu.memory_space<vmem>>, vector<8x128xf32>
      tpu.vector_store %arg4[%c0_28, %c0_29], %47 {strides = array<i32>} : memref<8x128xf32, #tpu.memory_space<vmem>>, vector<8x128xf32>,
    } else {
    }
    return
  }
  func.func @transform_0(%arg0: i32, %arg1: i32) -> (i32, i32) {
    %c0_i32 = arith.constant 0 : i32
    return %arg0, %arg1 : i32, i32
  }
  func.func @transform_1(%arg0: i32, %arg1: i32) -> (i32, i32) {
    %c0_i32 = arith.constant 0 : i32
    %c0_i32_0 = arith.constant 0 : i32
    return %arg0, %c0_i32 : i32, i32
  }
  func.func @transform_2(%arg0: i32, %arg1: i32) -> (i32, i32) {
    %c0_i32 = arith.constant 0 : i32
    %c0_i32_0 = arith.constant 0 : i32
    return %arg0, %c0_i32 : i32, i32
  }
}

</mosaic_0001>

<llo_original>
// kernel: cross_entropy_loss.1
$region0: #{cross_entropy_loss.1}
  #allocation0 [shape = 'u32[]', space=smem, size = 0x4, offset = 0x4, fixed_abs, tag = 'smem constant byte address 0x4 - core index']
  #allocation1 [shape = 'u32[72,128]{1,0:T(1,128)}', space=vmem, size = 0x9000, scoped, tag = 'internal scratch']
  #allocation2 [shape = 'f32[8,1]{1,0:T(8,128)}', space=vmem, size = 0x1000, scoped, tag = 'scratch operand']
  #allocation3 [shape = 'f32[8,1]{1,0:T(8,128)}', space=vmem, size = 0x1000, scoped, tag = 'scratch operand']
  #allocation4 [shape = 'f32[8,1]{1,0:T(8,128)}', space=vmem, size = 0x1000, scoped, tag = 'scratch operand']
  %s0 = inlined_call_operand.vmem [shape: f32[8,128], index: 0, kind: input, shape index: {}]
  %s1 = inlined_call_operand.vmem [shape: s32[8,1], index: 1, kind: input, shape index: {}]
  %s2 = inlined_call_operand.vmem [shape: f32[8,128], index: 2, kind: output, shape index: {}]
  %s3 = sld [smem:[#allocation0]]
  $region26: #{cross_entropy_loss.1} parent=0
    _
  %s5 = ssub.s32 1, %s3
  %s6 = scalar_select 0, %s5, %s3
  // Predicated region
  $region2: #{cross_entropy_loss.1} parent=0 // pred_check
    _
  $region3: #{cross_entropy_loss.1} parent=0 // pred_check_branch
    %8 = sbr.rel (0) target = $region5
  $region4: #{cross_entropy_loss.1} parent=0 // pred_region
    _
  $region5: #{cross_entropy_loss.1} parent=0 // pred_fallthru
    _
  // Predicated region
  $region6: #{cross_entropy_loss.1} parent=0 // pred_check
    _
  $region7: #{cross_entropy_loss.1} parent=0 // pred_check_branch
    %10 = sbr.rel (0) target = $region9
  $region8: #{cross_entropy_loss.1} parent=0 // pred_region
    _
  $region9: #{cross_entropy_loss.1} parent=0 // pred_fallthru
    _
  %p11 = scmp.eq.s32.totalorder 0, 0
  // Predicated region
  $region10: #{cross_entropy_loss.1} parent=0 // pred_check
    %p12 = pneg %p11
  $region11: #{cross_entropy_loss.1} parent=0 // pred_check_branch
    %14 = sbr.rel (%p12) target = $region13
  $region12: #{cross_entropy_loss.1} parent=0 // pred_region
    %vm15 = vcmask 7168
    %16 = vst.msk [vmem:[#allocation2] sm:$0xff] %vm15, -inf
    %17 = vst.msk [vmem:[#allocation3] sm:$0xff] %vm15, 0.0
    %18 = vst.msk [vmem:[#allocation4] sm:$0xff] %vm15, 0.0
  $region13: #{cross_entropy_loss.1} parent=0 // pred_fallthru
    _
  %v19 = vld [vmem:[%s0] sm:$0xff]
  %v20 = vld [vmem:[#allocation2] sm:$0xff]
  %21 = vmax.xlane.f32.xlu0 %v19
  %v22 = vpop.xlane.xlu0 %21
  %v23 = vmax.f32 %v20, %v22
  %v24 = vld [vmem:[#allocation3] sm:$0xff]
  %v25 = vsub.f32 %v20, %v23
  %v26 = vmul.f32 %v25, 1.442695
  %v27 = vpow.pop %v26
  %v28 = vmul.f32 %v24, %v27
  %30 = vset.pattern.permute.xlu0 0
  %31 = vperm.xlu0 %30, %v23
  %v32 = vpop.permute.xlu0 %31
  %v34 = vsub.f32 %v19, %v32
  %v35 = vmul.f32 %v34, 1.442695
  %v36 = vpow.pop %v35
  %37 = vadd.xlane.f32.xlu0 %v36
  %v38 = vpop.xlane.xlu0 %37
  %v39 = vadd.f32 %v28, %v38
  %vm40 = vcmask 7168
  %41 = vst.msk [vmem:[#allocation3] sm:$0xff] %vm40, %v39
  %42 = vst.msk [vmem:[#allocation2] sm:$0xff] %vm40, %v23
  %v43 = vlaneseq
  %v44 = vand.u32 %v43, 127
  %v45 = vld [vmem:[%s1] sm:$0xff]
  %s46 = smul.u32 0, 128
  %v47 = vstv %s46
  %v48 = vsub.s32 %v45, %v47
  %v49 = vld [vmem:[#allocation4] sm:$0xff]
  %50 = vset.pattern.permute.xlu0 0
  %51 = vperm.xlu0 %50, %v48
  %v52 = vpop.permute.xlu0 %51
  %vm53 = vcmp.eq.s32.totalorder %v44, %v52
  %v54 = vsel %vm53, %v19, 0.0
  %55 = vadd.xlane.f32.xlu0 %v54
  %v56 = vpop.xlane.xlu0 %55
  %v57 = vadd.f32 %v49, %v56
  %58 = vst.msk [vmem:[#allocation4] sm:$0xff] %vm40, %v57
  // Predicated region
  $region14: #{cross_entropy_loss.1} parent=0 // pred_check
    %p59 = pneg %p11
  $region15: #{cross_entropy_loss.1} parent=0 // pred_check_branch
    %61 = sbr.rel (%p59) target = $region17
  $region16: #{cross_entropy_loss.1} parent=0 // pred_region
    %v62 = vld [vmem:[#allocation2] sm:$0xff]
    %v63 = vld [vmem:[#allocation3] sm:$0xff]
    %v64 = vlog2.pop %v63
    %v65 = vmul.f32 %v64, 0.6931472
    %v66 = vadd.f32 %v62, %v65
    %v67 = vld [vmem:[#allocation4] sm:$0xff]
    %v68 = vsub.f32 %v66, %v67
    %v69 = vsel %vm40, %v68, 0.0
    %70 = vadd.xlane.f32.xlu0 %v69
    %v71 = vpop.xlane.xlu0 %70
    %v72 = vrot.slane %v71, 4
    %v73 = vadd.f32 %v71, %v72
    %v74 = vrot.slane %v73, 2
    %v75 = vadd.f32 %v73, %v74
    %v76 = vrot.slane %v75, 1
    %v77 = vadd.f32 %v75, %v76
    %s78 = vtos %v77
    %v79 = vstv %s78
    %80 = vst [vmem:[%s2] sm:$0xff] %v79
  $region17: #{cross_entropy_loss.1} parent=0 // pred_fallthru
    _
  // Predicated region
  $region18: #{cross_entropy_loss.1} parent=0 // pred_check
    _
  $region19: #{cross_entropy_loss.1} parent=0 // pred_check_branch
    %82 = sbr.rel (0) target = $region21
  $region20: #{cross_entropy_loss.1} parent=0 // pred_region
    _
  $region21: #{cross_entropy_loss.1} parent=0 // pred_fallthru
    _
  // Predicated region
  $region22: #{cross_entropy_loss.1} parent=0 // pred_check
    _
  $region23: #{cross_entropy_loss.1} parent=0 // pred_check_branch
    %84 = sbr.rel (0) target = $region25
  $region24: #{cross_entropy_loss.1} parent=0 // pred_region
    _
  $region25: #{cross_entropy_loss.1} parent=0 // pred_fallthru
    _

</llo_original>
